<compile_context>
chip_gen: v6e
topology: v6e:2x2x1
jax: 0.10.0
libtpu: 0.0.40
codegen_flags: <defaults>
</compile_context>

<pallas_src>
import functools

import numpy as np

import jax
import jax.numpy as jnp
from jax import lax
from jax.experimental import pallas as pl
from jax.experimental.pallas import tpu as pltpu


def cdr_kernel(x_ref, p_ref, o_ref, *, power, inv_gg: float):
    # x_ref: (T, H*W) f32    -- tile of flattened (n, c) maps (lane-dense)
    # p_ref: (H*W, P) bf16   -- resident 0/1 pooling-membership matrix
    # o_ref: (T, 1)   f32    -- per-(n, c) scalar result
    x = x_ref[...]
    p = p_ref[...].astype(jnp.float32)          # exact: entries are 0.0 / 1.0

    # g x g block *sums* via one lane-dense MXU matmul; the 1/g^2 mean scale
    # is folded into the scalar DR below (mathematically identical).
    s = jnp.dot(x, p, preferred_element_type=jnp.float32)            # (T, P)

    ma = jnp.max(s, axis=1, keepdims=True)                            # (T, 1)
    mi = jnp.min(s, axis=1, keepdims=True)                            # (T, 1)
    dr = (ma - mi) * jnp.float32(inv_gg) + jnp.float32(1e-4)

    base = jnp.float32(1.0) - dr
    if isinstance(power, int):
        # torch.pow with an integer exponent is well defined for negative
        # bases (dr can exceed 1); lax.integer_pow matches that behavior.
        out = lax.integer_pow(base, power)
    else:
        # Float exponent: matches torch (NaN for negative base), see review.
        out = jnp.power(base, jnp.float32(power))
    o_ref[...] = (out + jnp.float32(0.05)).astype(o_ref.dtype)


def _pooling_matrix(H: int, W: int, g: int) -> jnp.ndarray:
    """(H*W, (H//g)*(W//g)) 0/1 membership matrix.

    Built with numpy on the host (no per-call device work); 0/1 values are
    exactly representable in bf16, so storing it as bf16 halves its DMA and
    VMEM residency with zero accuracy loss after the in-kernel f32 upcast.
    """
    Hp, Wp = H // g, W // g
    idx = np.arange(H * W)
    cell = ((idx // W) // g) * Wp + (idx % W) // g                  # (H*W,)
    m = (cell[:, None] == np.arange(Hp * Wp)[None, :]).astype(np.float32)
    return jnp.asarray(m, dtype=jnp.bfloat16)


def _vmem_capacity_bytes() -> int:
    try:
        return int(pltpu.get_tpu_info().vmem_capacity_bytes)
    except Exception:
        return 64 * 1024 * 1024        # conservative: v7x per-TensorCore VMEM


def _choose_tile(nc: int, hw: int, pool_resident_bytes: int):
    """Largest NC tile fitting a per-generation VMEM budget.

    Budget ~75% of this chip's VMEM (v5e/v6e: 128 MiB, v7x: 64 MiB/TC),
    leaving headroom for Mosaic internal scratch.  Per-row pipeline cost is
    the double-buffered f32 input row (hw lanes) plus the double-buffered
    (T, 1) f32 output row, which pads to 128 lanes in VMEM.
    """
    vmem_cap = _vmem_capacity_bytes()
    budget = (vmem_cap * 3) // 4
    bytes_per_row = 2 * (hw + 128) * 4
    avail = max(budget - pool_resident_bytes, bytes_per_row * 8)
    t_cap = max(8, (avail // bytes_per_row) // 8 * 8)
    if nc <= t_cap:
        t = nc                          # full-dim block (always legal)
    else:
        t = t_cap                       # multiple of 8 -> (8, 128) rule ok
    vmem_limit = int(min(vmem_cap * 0.9, budget + 8 * 1024 * 1024))
    return int(t), vmem_limit


def cdr_forward(x: jnp.ndarray, grid_size: int, power) -> jnp.ndarray:
    """x: (N, C, H, W) float32, NCHW.  Returns (N, C, 1, 1) float32."""
    N, C, H, W = x.shape
    g = int(grid_size)
    assert H % g == 0 and W % g == 0
    NC, HW = N * C, H * W
    P = (H // g) * (W // g)

    # Lane-dense layout: spatial dims flattened onto the lane axis (free).
    x2 = x.reshape(NC, HW).astype(jnp.float32)
    pool_mat = _pooling_matrix(H, W, g)                          # (HW, P) bf16

    # Single-buffer the constant only when double-buffering it would waste
    # meaningful VMEM (its index_map is constant, so one buffer suffices).
    pool_bytes = HW * P * 2
    single_buffer_pool = pool_bytes > (1 << 20)
    pool_resident = pool_bytes * (1 if single_buffer_pool else 2)

    T, vmem_limit = _choose_tile(NC, HW, pool_resident)
    num_tiles = pl.cdiv(NC, T)

    pool_spec_kwargs = {}
    if single_buffer_pool:
        pool_spec_kwargs["pipeline_mode"] = pl.Buffered(1)
    pool_spec = pl.BlockSpec((HW, P), lambda i: (0, 0), **pool_spec_kwargs)

    out2 = pl.pallas_call(
        functools.partial(cdr_kernel, power=power, inv_gg=1.0 / (g * g)),
        out_shape=jax.ShapeDtypeStruct((NC, 1), jnp.float32),
        grid=(num_tiles,),
        in_specs=[
            pl.BlockSpec((T, HW), lambda i: (i, 0)),   # tiled, double-buffered
            pool_spec,                                  # resident constant
        ],
        out_specs=pl.BlockSpec((T, 1), lambda i: (i, 0)),
        compiler_params=pltpu.CompilerParams(
            # TODO(synk): on v7x, verify "parallel" shards NC across both
            # TensorCores; otherwise switch this axis to pltpu.CORE_PARALLEL.
            dimension_semantics=("parallel",),
            vmem_limit_bytes=vmem_limit,
        ),
    )(x2, pool_mat)

    return out2.reshape(N, C, 1, 1)


def cdr_reference(x: jnp.ndarray, grid_size: int, power) -> jnp.ndarray:
    """Pure-JAX reference mirroring the PyTorch module."""
    N, C, H, W = x.shape
    g = grid_size
    pooled = x.reshape(N, C, H // g, g, W // g, g).mean(axis=(3, 5))
    d = pooled.reshape(N, C, -1)
    ma = d.max(axis=2) + 1e-4
    mi = d.min(axis=2)
    dr = (ma - mi)[:, :, None, None]
    return jnp.power(1.0 - dr, power) + 0.05


if __name__ == "__main__":
    # Hyper-params of the module (deterministic, synthetic — no checkpoints).
    GRID = 4
    POWER = 2

    key = jax.random.PRNGKey(0)
    x = jax.random.normal(key, (2, 4, 16, 16), dtype=jnp.float32)

    out = jax.block_until_ready(cdr_forward(x, GRID, POWER))
    ref = cdr_reference(x, GRID, POWER)

    assert out.shape == (2, 4, 1, 1), out.shape
    assert jnp.allclose(out, ref, atol=1e-5, rtol=1e-5), (out, ref)

    print("KERNEL_OK")
</pallas_src>

<mosaic_0001>
module attributes {stable_mosaic.version = 11 : i64} {
  func.func @cdr_kernel(%arg0: i32, %arg1: memref<8x256xf32, #tpu.memory_space<vmem>>, %arg2: memref<256x16xbf16, #tpu.memory_space<vmem>>, %arg3: memref<8x1xf32, #tpu.memory_space<vmem>>) attributes {dimension_semantics = [#tpu.dimension_semantics<parallel>], iteration_bounds = array<i64: 1>, scalar_prefetch = 0 : i64, scratch_operands = 0 : i64, tpu.core_type = #tpu.core_type<tc>, window_params = [{transform_indices = @transform_0, window_bounds = array<i64: 8, 256>}, {pipeline_mode = #tpu.pipeline_mode<synchronous>, transform_indices = @transform_1, window_bounds = array<i64: 256, 16>}, {transform_indices = @transform_2, window_bounds = array<i64: 8, 1>}]} {
    %c0 = arith.constant 0 : index
    %c0_0 = arith.constant 0 : index
    %0 = vector.load %arg1[%c0, %c0_0] : memref<8x256xf32, #tpu.memory_space<vmem>>, vector<8x256xf32>
    %c0_1 = arith.constant 0 : index
    %c0_2 = arith.constant 0 : index
    %1 = vector.load %arg2[%c0_1, %c0_2] : memref<256x16xbf16, #tpu.memory_space<vmem>>, vector<256x16xbf16>
    %2 = arith.extf %1 : vector<256x16xbf16> to vector<256x16xf32>
    %cst = arith.constant dense<0.000000e+00> : vector<8x16xf32>
    %3 = tpu.matmul %0, %2, %cst {dimension_numbers = #tpu.dot_dimension_numbers<[1], [0], [0], [1], [0, 0, 1, 1], [], []>} : vector<8x256xf32>, vector<256x16xf32>, vector<8x16xf32> -> vector<8x16xf32>
    %cst_3 = arith.constant dense<0xFF800000> : vector<8xf32>
    %4 = vector.multi_reduction <maximumf>, %3, %cst_3 [1] : vector<8x16xf32> to vector<8xf32>
    %5 = vector.shape_cast %4 : vector<8xf32> to vector<8x1xf32>
    %cst_4 = arith.constant dense<0x7F800000> : vector<8xf32>
    %6 = vector.multi_reduction <minimumf>, %3, %cst_4 [1] : vector<8x16xf32> to vector<8xf32>
    %7 = vector.shape_cast %6 : vector<8xf32> to vector<8x1xf32>
    %8 = arith.subf %5, %7 : vector<8x1xf32>
    %cst_5 = arith.constant 6.250000e-02 : f32
    %9 = vector.broadcast %cst_5 : f32 to vector<8x1xf32>
    %10 = arith.mulf %8, %9 : vector<8x1xf32>
    %cst_6 = arith.constant 9.99999974E-5 : f32
    %11 = vector.broadcast %cst_6 : f32 to vector<8x1xf32>
    %12 = arith.addf %10, %11 : vector<8x1xf32>
    %cst_7 = arith.constant 1.000000e+00 : f32
    %13 = vector.broadcast %cst_7 : f32 to vector<8x1xf32>
    %14 = arith.subf %13, %12 : vector<8x1xf32>
    %15 = arith.mulf %14, %14 : vector<8x1xf32>
    %cst_8 = arith.constant 5.000000e-02 : f32
    %16 = vector.broadcast %cst_8 : f32 to vector<8x1xf32>
    %17 = arith.addf %15, %16 : vector<8x1xf32>
    %c0_9 = arith.constant 0 : index
    %c0_10 = arith.constant 0 : index
    %18 = vector.load %arg3[%c0_9, %c0_10] : memref<8x1xf32, #tpu.memory_space<vmem>>, vector<8x1xf32>
    tpu.vector_store %arg3[%c0_9, %c0_10], %17 {strides = array<i32>} : memref<8x1xf32, #tpu.memory_space<vmem>>, vector<8x1xf32>,
    return
  }
  func.func @transform_0(%arg0: i32) -> (i32, i32) {
    %c0_i32 = arith.constant 0 : i32
    %c0_i32_0 = arith.constant 0 : i32
    return %arg0, %c0_i32 : i32, i32
  }
  func.func @transform_1(%arg0: i32) -> (i32, i32) {
    %c0_i32 = arith.constant 0 : i32
    %c0_i32_0 = arith.constant 0 : i32
    %c0_i32_1 = arith.constant 0 : i32
    return %c0_i32, %c0_i32_0 : i32, i32
  }
  func.func @transform_2(%arg0: i32) -> (i32, i32) {
    %c0_i32 = arith.constant 0 : i32
    %c0_i32_0 = arith.constant 0 : i32
    return %arg0, %c0_i32 : i32, i32
  }
}

</mosaic_0001>

<llo_original>
// kernel: tpu_custom_call.1
$region0: #{tpu_custom_call.1}
  #allocation0 [shape = 'u32[]', space=smem, size = 0x4, offset = 0x4, fixed_abs, tag = 'smem constant byte address 0x4 - core index']
  #allocation1 [shape = 'u32[144,128]{1,0:T(1,128)}', space=vmem, size = 0x12000, scoped, tag = 'internal scratch']
  %s0 = inlined_call_operand.vmem [shape: f32[8,256], index: 0, kind: input, shape index: {}]
  %s1 = inlined_call_operand.vmem [shape: bf16[256,16], index: 1, kind: input, shape index: {}]
  %s2 = inlined_call_operand.vmem [shape: f32[8,1], index: 2, kind: output, shape index: {}]
  %s3 = sld [smem:[#allocation0]]
  $region18: #{tpu_custom_call.1} parent=0
    _
  %s5 = ssub.s32 1, %s3
  %s6 = scalar_select 0, %s5, %s3
  // Predicated region
  $region2: #{tpu_custom_call.1} parent=0 // pred_check
    _
  $region3: #{tpu_custom_call.1} parent=0 // pred_check_branch
    %8 = sbr.rel (0) target = $region5
  $region4: #{tpu_custom_call.1} parent=0 // pred_region
    _
  $region5: #{tpu_custom_call.1} parent=0 // pred_fallthru
    _
  // Predicated region
  $region6: #{tpu_custom_call.1} parent=0 // pred_check
    _
  $region7: #{tpu_custom_call.1} parent=0 // pred_check_branch
    %10 = sbr.rel (0) target = $region9
  $region8: #{tpu_custom_call.1} parent=0 // pred_region
    _
  $region9: #{tpu_custom_call.1} parent=0 // pred_fallthru
    _
  %v11 = vld [vmem:[%s0] sm:$0xff]
  %v12 = vld [vmem:[%s0 + $0x8] sm:$0xff]
  %v13 = vld [vmem:[%s1] sm:$0xf]
  %v14 = vld [vmem:[%s1 + $0x4] sm:$0xf]
  %v15 = vld [vmem:[%s1 + $0x8] sm:$0xf]
  %v16 = vld [vmem:[%s1 + $0xc] sm:$0xf]
  %v17 = vld [vmem:[%s1 + $0x10] sm:$0xf]
  %v18 = vld [vmem:[%s1 + $0x14] sm:$0xf]
  %v19 = vld [vmem:[%s1 + $0x18] sm:$0xf]
  %v20 = vld [vmem:[%s1 + $0x1c] sm:$0xf]
  %v21 = vld [vmem:[%s1 + $0x20] sm:$0xf]
  %v22 = vld [vmem:[%s1 + $0x24] sm:$0xf]
  %v23 = vld [vmem:[%s1 + $0x28] sm:$0xf]
  %v24 = vld [vmem:[%s1 + $0x2c] sm:$0xf]
  %v25 = vld [vmem:[%s1 + $0x30] sm:$0xf]
  %v26 = vld [vmem:[%s1 + $0x34] sm:$0xf]
  %v27 = vld [vmem:[%s1 + $0x38] sm:$0xf]
  %v28 = vld [vmem:[%s1 + $0x3c] sm:$0xf]
  %v29 = vld [vmem:[%s1 + $0x40] sm:$0xf]
  %v30 = vld [vmem:[%s1 + $0x44] sm:$0xf]
  %v31 = vld [vmem:[%s1 + $0x48] sm:$0xf]
  %v32 = vld [vmem:[%s1 + $0x4c] sm:$0xf]
  %v33 = vld [vmem:[%s1 + $0x50] sm:$0xf]
  %v34 = vld [vmem:[%s1 + $0x54] sm:$0xf]
  %v35 = vld [vmem:[%s1 + $0x58] sm:$0xf]
  %v36 = vld [vmem:[%s1 + $0x5c] sm:$0xf]
  %v37 = vld [vmem:[%s1 + $0x60] sm:$0xf]
  %v38 = vld [vmem:[%s1 + $0x64] sm:$0xf]
  %v39 = vld [vmem:[%s1 + $0x68] sm:$0xf]
  %v40 = vld [vmem:[%s1 + $0x6c] sm:$0xf]
  %v41 = vld [vmem:[%s1 + $0x70] sm:$0xf]
  %v42 = vld [vmem:[%s1 + $0x74] sm:$0xf]
  %v43 = vld [vmem:[%s1 + $0x78] sm:$0xf]
  %v44 = vld [vmem:[%s1 + $0x7c] sm:$0xf]
  %v45 = vunpack.c.l.bf16 %v13
  %v46 = vunpack.c.l.bf16 %v14
  %v47 = vunpack.c.l.bf16 %v15
  %v48 = vunpack.c.l.bf16 %v16
  %v49 = vunpack.c.l.bf16 %v17
  %v50 = vunpack.c.l.bf16 %v18
  %v51 = vunpack.c.l.bf16 %v19
  %v52 = vunpack.c.l.bf16 %v20
  %v53 = vunpack.c.l.bf16 %v21
  %v54 = vunpack.c.l.bf16 %v22
  %v55 = vunpack.c.l.bf16 %v23
  %v56 = vunpack.c.l.bf16 %v24
  %v57 = vunpack.c.l.bf16 %v25
  %v58 = vunpack.c.l.bf16 %v26
  %v59 = vunpack.c.l.bf16 %v27
  %v60 = vunpack.c.l.bf16 %v28
  %v61 = vunpack.c.l.bf16 %v29
  %v62 = vunpack.c.l.bf16 %v30
  %v63 = vunpack.c.l.bf16 %v31
  %v64 = vunpack.c.l.bf16 %v32
  %v65 = vunpack.c.l.bf16 %v33
  %v66 = vunpack.c.l.bf16 %v34
  %v67 = vunpack.c.l.bf16 %v35
  %v68 = vunpack.c.l.bf16 %v36
  %v69 = vunpack.c.l.bf16 %v37
  %v70 = vunpack.c.l.bf16 %v38
  %v71 = vunpack.c.l.bf16 %v39
  %v72 = vunpack.c.l.bf16 %v40
  %v73 = vunpack.c.l.bf16 %v41
  %v74 = vunpack.c.l.bf16 %v42
  %v75 = vunpack.c.l.bf16 %v43
  %v76 = vunpack.c.l.bf16 %v44
  %77 = vmatprep.subr.mxu0 0.0
  %78 = vmatpush1.msra.mxu0 %v60
  %79 = vmatprep.subr.mxu0 0.0
  %80 = vmatpush1.msra.mxu0 %v59
  %81 = vmatprep.subr.mxu0 0.0
  %82 = vmatpush1.msra.mxu0 %v58
  %83 = vmatprep.subr.mxu0 0.0
  %84 = vmatpush1.msra.mxu0 %v57
  %85 = vmatprep.subr.mxu0 0.0
  %86 = vmatpush1.msra.mxu0 %v56
  %87 = vmatprep.subr.mxu0 0.0
  %88 = vmatpush1.msra.mxu0 %v55
  %89 = vmatprep.subr.mxu0 0.0
  %90 = vmatpush1.msra.mxu0 %v54
  %91 = vmatprep.subr.mxu0 0.0
  %92 = vmatpush1.msra.mxu0 %v53
  %93 = vmatprep.subr.mxu0 0.0
  %94 = vmatpush1.msra.mxu0 %v52
  %95 = vmatprep.subr.mxu0 0.0
  %96 = vmatpush1.msra.mxu0 %v51
  %97 = vmatprep.subr.mxu0 0.0
  %98 = vmatpush1.msra.mxu0 %v50
  %99 = vmatprep.subr.mxu0 0.0
  %100 = vmatpush1.msra.mxu0 %v49
  %101 = vmatprep.subr.mxu0 0.0
  %102 = vmatpush1.msra.mxu0 %v48
  %103 = vmatprep.subr.mxu0 0.0
  %104 = vmatpush1.msra.mxu0 %v47
  %105 = vmatprep.subr.mxu0 0.0
  %106 = vmatpush1.msra.mxu0 %v46
  %107 = vmatprep.subr.mxu0 0.0
  %108 = vmatpush1.msra.mxu0 %v45
  %109 = vmatprep.subr.mxu0 0.0
  %110 = vmatpush2.msra.mxu0 %v76
  %111 = vmatprep.subr.mxu0 0.0
  %112 = vmatpush2.msra.mxu0 %v75
  %113 = vmatprep.subr.mxu0 0.0
  %114 = vmatpush2.msra.mxu0 %v74
  %115 = vmatprep.subr.mxu0 0.0
  %116 = vmatpush2.msra.mxu0 %v73
  %117 = vmatprep.subr.mxu0 0.0
  %118 = vmatpush2.msra.mxu0 %v72
  %119 = vmatprep.subr.mxu0 0.0
  %120 = vmatpush2.msra.mxu0 %v71
  %121 = vmatprep.subr.mxu0 0.0
  %122 = vmatpush2.msra.mxu0 %v70
  %123 = vmatprep.subr.mxu0 0.0
  %124 = vmatpush2.msra.mxu0 %v69
  %125 = vmatprep.subr.mxu0 0.0
  %126 = vmatpush2.msra.mxu0 %v68
  %127 = vmatprep.subr.mxu0 0.0
  %128 = vmatpush2.msra.mxu0 %v67
  %129 = vmatprep.subr.mxu0 0.0
  %130 = vmatpush2.msra.mxu0 %v66
  %131 = vmatprep.subr.mxu0 0.0
  %132 = vmatpush2.msra.mxu0 %v65
  %133 = vmatprep.subr.mxu0 0.0
  %134 = vmatpush2.msra.mxu0 %v64
  %135 = vmatprep.subr.mxu0 0.0
  %136 = vmatpush2.msra.mxu0 %v63
  %137 = vmatprep.subr.mxu0 0.0
  %138 = vmatpush2.msra.mxu0 %v62
  %139 = vmatprep.subr.mxu0 0.0
  %140 = vmatpush2.msra.mxu0 %v61
  %141 = vmatprep.mubr.f32.mxu0 %v12
  %142 = vmatmul.mubr.f32.gmra.mxu0 %v11
  %v143 = vpop.f32.mrf.mxu0
  %v144 = vadd.f32 0.0, %v143
  %v145 = vpop.f32.mrf.mxu0
  %146 = vdwg.mxu0
  %vm147 = vcmask 130048
  %v148 = vsel %vm147, %v144, -inf
  %149 = vmax.xlane.f32.xlu0 %v148
  %v150 = vpop.xlane.xlu0 %149
  %v151 = vsel %vm147, %v144, inf
  %152 = vmin.xlane.f32.xlu0 %v151
  %v153 = vpop.xlane.xlu0 %152
  %v154 = vsub.f32 %v150, %v153
  %v155 = vmul.f32 %v154, 0.0625
  %v156 = vadd.f32 %v155, 0.0001
  %v157 = vsub.f32 1.0, %v156
  %v158 = vmul.f32 %v157, %v157
  %v159 = vadd.f32 %v158, 0.05
  %vm160 = vcmask 7168
  %161 = vst.msk [vmem:[%s2] sm:$0xff] %vm160, %v159
  // Predicated region
  $region10: #{tpu_custom_call.1} parent=0 // pred_check
    _
  $region11: #{tpu_custom_call.1} parent=0 // pred_check_branch
    %163 = sbr.rel (0) target = $region13
  $region12: #{tpu_custom_call.1} parent=0 // pred_region
    _
  $region13: #{tpu_custom_call.1} parent=0 // pred_fallthru
    _
  // Predicated region
  $region14: #{tpu_custom_call.1} parent=0 // pred_check
    _
  $region15: #{tpu_custom_call.1} parent=0 // pred_check_branch
    %165 = sbr.rel (0) target = $region17
  $region16: #{tpu_custom_call.1} parent=0 // pred_region
    _
  $region17: #{tpu_custom_call.1} parent=0 // pred_fallthru
    _

</llo_original>
